<compile_context>
chip_gen: v7x
topology: tpu7x:2x2x1
jax: 0.10.0
libtpu: 0.0.40
codegen_flags: <defaults>
</compile_context>

<pallas_src>
import math

import jax
import jax.numpy as jnp
from jax.experimental import pallas as pl
from jax.experimental.pallas import tpu as pltpu


def _cdiv(a, b):
    return -(-a // b)


def _sublane_multiple(dtype):
    # f32 -> 8, bf16 -> 16, int8/fp8 -> 32 (sub-32-bit dtypes pack along sublanes).
    return max(8, 32 // jnp.dtype(dtype).itemsize)


def _device_profile():
    """Best-effort (target_block_bytes_per_stream, num_tensorcores, vmem_capacity_bytes)."""
    kind = ""
    try:
        kind = jax.devices()[0].device_kind.lower()
    except Exception:
        pass
    vmem_cap = 128 * 1024 * 1024  # v5e/v6e physical VMEM default
    try:
        cap = getattr(pltpu.get_tpu_info(), "vmem_capacity_bytes", None)
        if cap:
            vmem_cap = int(cap)
    except Exception:
        pass
    if "7" in kind:                      # v7x: 2 TCs/chip, 64 MiB/TC VMEM, 3.2 TB/s HBM
        return 4 << 20, 2, vmem_cap
    if "v5" in kind:                     # v5e: keep inside 16 MiB default scoped VMEM
        return 1 << 20, 1, vmem_cap
    return 2 << 20, 1, vmem_cap          # v6e / unknown default


def _choose_layout(n, dtype):
    """Return (lane_width, rows, sublane) for an exact lane-dense slab, else None."""
    sub = _sublane_multiple(dtype)
    for w in (4096, 2048, 1024, 512, 256, 128):
        if n % (sub * w) == 0:
            return w, n // w, sub
    return None  # no exact tiling -> plain-JAX fallback (never pad+slice)


def _ratio_kernel(w_ref, x1_ref, x2_ref, o_ref):
    # w_ref: (2,) f32 softmax weights, scalar-prefetched into SMEM.
    w0 = w_ref[0]
    w1 = w_ref[1]
    # Pure elementwise blend; SMEM scalars broadcast for free in the VPU multiply.
    o_ref[...] = (x1_ref[...] * w0 + x2_ref[...] * w1).astype(o_ref.dtype)


def _jax_blend(w, x1, x2):
    # XLA's fused elementwise loop is already HBM-roofline for this op.
    out = x1.astype(jnp.float32) * w[0] + x2.astype(jnp.float32) * w[1]
    return out.astype(x1.dtype)


def ratio_forward(ratio, x1, x2):
    """out = x1 * softmax(ratio)[0] + x2 * softmax(ratio)[1], matching torch semantics."""
    assert x1.shape == x2.shape and x1.dtype == x2.dtype
    orig_shape = x1.shape
    dtype = x1.dtype
    itemsize = jnp.dtype(dtype).itemsize
    n = math.prod(orig_shape)

    # Softmax over the 2-element parameter is hoisted out of the hot loop.
    w = jax.nn.softmax(ratio.astype(jnp.float32).reshape(-1), axis=-1)  # (2,) f32

    layout = _choose_layout(n, dtype)
    if n == 0 or layout is None:
        # Sizes that don't tile cleanly: padding + slicing around the kernel would
        # add extra full HBM passes (~+130% traffic on a 3-pass blend). Fall back.
        return _jax_blend(w, x1, x2).reshape(orig_shape)

    lane_w, rows, sub = layout
    target_block_bytes, num_tc, vmem_cap = _device_profile()

    # Rows per block: ~target_block_bytes per stream, a multiple of the dtype's
    # sublane packing so (8,128)-tiling is respected.
    target_rows = max(sub, (target_block_bytes // (lane_w * itemsize)) // sub * sub)

    if num_tc > 1 and rows >= 2 * sub:
        # Multi-TensorCore (v7x): make the grid a multiple of the TC count so the
        # "parallel" axis shards evenly across cores (no 50%/33% imbalance).
        block_rows = min(target_rows, _cdiv(_cdiv(rows, num_tc), sub) * sub)
        block_rows = max(block_rows, sub)
        grid = _cdiv(rows, block_rows)
        while grid % num_tc != 0 and block_rows > sub:
            block_rows -= sub
            grid = _cdiv(rows, block_rows)
    else:
        # Single TC (v5e/v6e): never split a tile that already fits one block —
        # it only adds a grid step (~0.35 us) with zero gain.
        block_rows = min(target_rows, rows)
        grid = _cdiv(rows, block_rows)
    # Ragged last block (rows % block_rows != 0) is fine: elementwise kernel,
    # Pallas masks the overhanging output rows.

    # VMEM budget: 3 streams x 2 pipeline buffers x block + slack, capped at ~3/4
    # of physical VMEM for the generation (48 MiB on v7x, 96 MiB on v5e/v6e).
    block_bytes = block_rows * lane_w * itemsize
    vmem_limit = 2 * 3 * block_bytes + (4 << 20)
    vmem_limit = min(vmem_limit, (vmem_cap * 3) // 4)
    vmem_limit = max(vmem_limit, 2 * 3 * block_bytes + (1 << 20))

    x1s = x1.reshape(rows, lane_w)   # contiguous reshape: no data movement
    x2s = x2.reshape(rows, lane_w)

    out_slab = pl.pallas_call(
        _ratio_kernel,
        out_shape=jax.ShapeDtypeStruct((rows, lane_w), dtype),
        grid_spec=pltpu.PrefetchScalarGridSpec(
            num_scalar_prefetch=1,                  # softmax weights -> SMEM scalars
            grid=(grid,),
            in_specs=[
                pl.BlockSpec((block_rows, lane_w), lambda i, w_ref: (i, 0)),  # x1 tile
                pl.BlockSpec((block_rows, lane_w), lambda i, w_ref: (i, 0)),  # x2 tile
            ],
            out_specs=pl.BlockSpec((block_rows, lane_w), lambda i, w_ref: (i, 0)),
        ),
        compiler_params=pltpu.CompilerParams(
            dimension_semantics=("parallel",),
            vmem_limit_bytes=int(vmem_limit),
        ),
        # TODO(synk): add input_output_aliases={1: 0} when the caller can donate x1
        # (removes the N-sized output allocation; HBM traffic is unchanged).
    )(w, x1s, x2s)

    return out_slab.reshape(orig_shape)


class Ratio:
    """JAX/Pallas port of the PyTorch Ratio module."""

    def __init__(self):
        # Deterministic init, exactly as in the PyTorch __init__: ratio = [0.0, 0.0]
        self.ratio = jnp.array([0.0, 0.0], dtype=jnp.float32)

    def softmax_radio(self):
        return jax.nn.softmax(self.ratio, axis=-1)

    def forward(self, x1, x2):
        return ratio_forward(self.ratio, x1, x2)


if __name__ == "__main__":
    key = jax.random.PRNGKey(0)
    k1, k2, k3, k4 = jax.random.split(key, 4)

    model = Ratio()
    w = jax.nn.softmax(model.ratio, axis=-1)

    # Primary: NCHW f32 input (2,4,16,16) -> aligned size -> Pallas kernel path.
    x1 = jax.random.normal(k1, (2, 4, 16, 16), dtype=jnp.float32)
    x2 = jax.random.normal(k2, (2, 4, 16, 16), dtype=jnp.float32)
    out = jax.block_until_ready(model.forward(x1, x2))
    ref = x1 * w[0] + x2 * w[1]
    assert out.shape == x1.shape and out.dtype == x1.dtype
    assert jnp.allclose(out, ref, atol=1e-6, rtol=1e-6)

    # Unaligned element count -> plain-JAX fallback (no pad/slice HBM passes).
    y1 = jax.random.normal(k3, (2, 3, 7, 5), dtype=jnp.float32)
    y2 = jax.random.normal(k4, (2, 3, 7, 5), dtype=jnp.float32)
    out2 = jax.block_until_ready(model.forward(y1, y2))
    ref2 = y1 * w[0] + y2 * w[1]
    assert jnp.allclose(out2, ref2, atol=1e-6, rtol=1e-6)

    # bf16 input on the kernel path (sublane packing 16, f32 accumulate, bf16 store).
    b1 = x1.astype(jnp.bfloat16)
    b2 = x2.astype(jnp.bfloat16)
    out3 = jax.block_until_ready(model.forward(b1, b2))
    ref3 = (b1.astype(jnp.float32) * w[0] + b2.astype(jnp.float32) * w[1]).astype(jnp.bfloat16)
    assert out3.dtype == jnp.bfloat16
    assert jnp.allclose(out3.astype(jnp.float32), ref3.astype(jnp.float32),
                        atol=5e-2, rtol=5e-2)

    print("KERNEL_OK")
</pallas_src>

<mosaic_0001>
module attributes {stable_mosaic.version = 11 : i64} {
  func.func @_ratio_kernel(%arg0: i32, %arg1: memref<2xf32, #tpu.memory_space<smem>>, %arg2: memref<8x256xf32, #tpu.memory_space<vmem>>, %arg3: memref<8x256xf32, #tpu.memory_space<vmem>>, %arg4: memref<8x256xf32, #tpu.memory_space<vmem>>) attributes {dimension_semantics = [#tpu.dimension_semantics<parallel>], iteration_bounds = array<i64: 1>, scalar_prefetch = 1 : i64, scratch_operands = 0 : i64, tpu.core_type = #tpu.core_type<tc>, window_params = [{transform_indices = @transform_0, window_bounds = array<i64: 8, 256>}, {transform_indices = @transform_1, window_bounds = array<i64: 8, 256>}, {transform_indices = @transform_2, window_bounds = array<i64: 8, 256>}]} {
    %c0 = arith.constant 0 : index
    %0 = memref.load %arg1[%c0] : memref<2xf32, #tpu.memory_space<smem>>
    %c1 = arith.constant 1 : index
    %1 = memref.load %arg1[%c1] : memref<2xf32, #tpu.memory_space<smem>>
    %c0_0 = arith.constant 0 : index
    %c0_1 = arith.constant 0 : index
    %2 = vector.load %arg2[%c0_0, %c0_1] : memref<8x256xf32, #tpu.memory_space<vmem>>, vector<8x256xf32>
    %3 = vector.broadcast %0 : f32 to vector<8x256xf32>
    %4 = arith.mulf %2, %3 : vector<8x256xf32>
    %c0_2 = arith.constant 0 : index
    %c0_3 = arith.constant 0 : index
    %5 = vector.load %arg3[%c0_2, %c0_3] : memref<8x256xf32, #tpu.memory_space<vmem>>, vector<8x256xf32>
    %6 = vector.broadcast %1 : f32 to vector<8x256xf32>
    %7 = arith.mulf %5, %6 : vector<8x256xf32>
    %8 = arith.addf %4, %7 : vector<8x256xf32>
    %c0_4 = arith.constant 0 : index
    %c0_5 = arith.constant 0 : index
    %9 = vector.load %arg4[%c0_4, %c0_5] : memref<8x256xf32, #tpu.memory_space<vmem>>, vector<8x256xf32>
    tpu.vector_store %arg4[%c0_4, %c0_5], %8 {strides = array<i32>} : memref<8x256xf32, #tpu.memory_space<vmem>>, vector<8x256xf32>,
    return
  }
  func.func @transform_0(%arg0: i32, %arg1: memref<2xf32, #tpu.memory_space<smem>>) -> (i32, i32) {
    %c0_i32 = arith.constant 0 : i32
    %c0_i32_0 = arith.constant 0 : i32
    return %arg0, %c0_i32 : i32, i32
  }
  func.func @transform_1(%arg0: i32, %arg1: memref<2xf32, #tpu.memory_space<smem>>) -> (i32, i32) {
    %c0_i32 = arith.constant 0 : i32
    %c0_i32_0 = arith.constant 0 : i32
    return %arg0, %c0_i32 : i32, i32
  }
  func.func @transform_2(%arg0: i32, %arg1: memref<2xf32, #tpu.memory_space<smem>>) -> (i32, i32) {
    %c0_i32 = arith.constant 0 : i32
    %c0_i32_0 = arith.constant 0 : i32
    return %arg0, %c0_i32 : i32, i32
  }
}

</mosaic_0001>

<llo_original>
// kernel: tpu_custom_call.1
$region0: #{tpu_custom_call.1}
  #allocation0 [shape = 'u32[]', space=smem, size = 0x4, offset = 0x4, fixed_abs, tag = 'smem constant byte address 0x4 - core index']
  #allocation1 [shape = 'u32[144,128]{1,0:T(1,128)}', space=vmem, size = 0x12000, scoped, tag = 'internal scratch']
  #allocation2 [shape = 's32[1]{0}', space=sflag, size = 0x4, scoped, tag = 'scoped memory for tpu_custom_call.1']
  #allocation3 [shape = 'u8[512]{0}', space=smem, size = 0x200, scoped, tag = 'prefetched SMEM operand 0']
  %s0 = inlined_call_operand.hbm [shape: f32[2], index: 0, kind: input, shape index: {}]
  %s1 = inlined_call_operand.hbm [shape: f32[8,256], index: 1, kind: input, shape index: {}]
  %s2 = inlined_call_operand.hbm [shape: f32[8,256], index: 2, kind: input, shape index: {}]
  %s3 = inlined_call_operand.hbm [shape: f32[8,256], index: 3, kind: output, shape index: {}]
  %s4 = sld [smem:[#allocation0]]
  $region26: #{tpu_custom_call.1} parent=0
    _
  %s6 = ssub.s32 1, %s4
  %s7 = scalar_select 0, %s6, %s4
  %9 = dma.hbm_to_smem %s0, 16, [#allocation3], [#allocation2]
  %10 = dma.done [#allocation2], 16
  %11 = sfence
  $region1: #{tpu_custom_call.1} parent=0
    #allocation4 [shape = 'u8[8192]{0}', space=vmem, size = 0x2000, scoped, tag = 'input window, operand 1, single buffered']
    #allocation5 [shape = 's32[1]{0}', space=sflag, size = 0x4, scoped, tag = 'scoped memory for tpu_custom_call.1']
    #allocation6 [shape = 's32[1]{0}', space=sflag, size = 0x4, scoped, tag = 'scoped memory for tpu_custom_call.1']
    #allocation7 [shape = 'u8[8192]{0}', space=vmem, size = 0x2000, scoped, tag = 'input window, operand 2, single buffered']
    #allocation8 [shape = 's32[1]{0}', space=sflag, size = 0x4, scoped, tag = 'scoped memory for tpu_custom_call.1']
    #allocation9 [shape = 'u8[8192]{0}', space=vmem, size = 0x2000, scoped, tag = 'output window, operand 0, single buffered']
    %12 = vsyncpa [#allocation5], 0
    %13 = vsyncpa [#allocation8], 0
    %14 = vsyncpa [#allocation6], 0
    // Predicated region
    $region2: #{tpu_custom_call.1} parent=1 // pred_check
      _
    $region3: #{tpu_custom_call.1} parent=1 // pred_check_branch
      %16 = sbr.rel (0) target = $region5
    $region4: #{tpu_custom_call.1} parent=1 // pred_region
      %s18 = ssub.s32 256, 256
      %19 = vsyncadd [#allocation5], %s18
      %s21 = sshll.u32 [#allocation4], 4
      %s22 = int_to_ptr.vmem [resolvable:$true] %s21
      %24 = dma.hbm_to_vmem [thread:$0]  %s1, 256, %s22, [#allocation5]
    $region5: #{tpu_custom_call.1} parent=1 // pred_fallthru
      _
    // Predicated region
    $region6: #{tpu_custom_call.1} parent=1 // pred_check
      _
    $region7: #{tpu_custom_call.1} parent=1 // pred_check_branch
      %26 = sbr.rel (0) target = $region9
    $region8: #{tpu_custom_call.1} parent=1 // pred_region
      %s28 = ssub.s32 256, 256
      %29 = vsyncadd [#allocation8], %s28
      %s31 = sshll.u32 [#allocation7], 4
      %s32 = int_to_ptr.vmem [resolvable:$true] %s31
      %34 = dma.hbm_to_vmem [thread:$0]  %s2, 256, %s32, [#allocation8]
    $region9: #{tpu_custom_call.1} parent=1 // pred_fallthru
      _
    // Predicated region
    $region10: #{tpu_custom_call.1} parent=1 // pred_check
      _
    $region11: #{tpu_custom_call.1} parent=1 // pred_check_branch
      %36 = sbr.rel (0) target = $region13
    $region12: #{tpu_custom_call.1} parent=1 // pred_region
      %37 = dma.done [#allocation5], 256
    $region13: #{tpu_custom_call.1} parent=1 // pred_fallthru
      _
    // Predicated region
    $region14: #{tpu_custom_call.1} parent=1 // pred_check
      _
    $region15: #{tpu_custom_call.1} parent=1 // pred_check_branch
      %39 = sbr.rel (0) target = $region17
    $region16: #{tpu_custom_call.1} parent=1 // pred_region
      %40 = dma.done [#allocation8], 256
    $region17: #{tpu_custom_call.1} parent=1 // pred_fallthru
      _
    %s41 = sld [smem:[#allocation3]]
    %s42 = sld [smem:[#allocation3 + $0x1]]
    %v43 = vld [vmem:[#allocation4] sm:$0xff]
    %v44 = vld [vmem:[#allocation4 + $0x8] sm:$0xff]
    %v45 = vstv %s41
    %v46 = vmul.f32 %v43, %v45
    %v47 = vmul.f32 %v44, %v45
    %v48 = vld [vmem:[#allocation7] sm:$0xff]
    %v49 = vld [vmem:[#allocation7 + $0x8] sm:$0xff]
    %v50 = vstv %s42
    %v51 = vmul.f32 %v48, %v50
    %v52 = vmul.f32 %v49, %v50
    %v53 = vadd.f32 %v46, %v51
    %v54 = vadd.f32 %v47, %v52
    %55 = vst [vmem:[#allocation9] sm:$0xff] %v53
    %56 = vst [vmem:[#allocation9 + $0x8] sm:$0xff] %v54
    // Predicated region
    $region18: #{tpu_custom_call.1} parent=1 // pred_check
      _
    $region19: #{tpu_custom_call.1} parent=1 // pred_check_branch
      %58 = sbr.rel (0) target = $region21
    $region20: #{tpu_custom_call.1} parent=1 // pred_region
      %s60 = ssub.s32 256, 256
      %61 = vsyncadd [#allocation6], %s60
      %s63 = sshll.u32 [#allocation9], 4
      %s64 = int_to_ptr.vmem [resolvable:$true] %s63
      %66 = dma.vmem_to_hbm [thread:$0]  %s64, 256, %s3, [#allocation6]
    $region21: #{tpu_custom_call.1} parent=1 // pred_fallthru
      _
    // Predicated region
    $region22: #{tpu_custom_call.1} parent=1 // pred_check
      _
    $region23: #{tpu_custom_call.1} parent=1 // pred_check_branch
      %68 = sbr.rel (0) target = $region25
    $region24: #{tpu_custom_call.1} parent=1 // pred_region
      %69 = dma.done [#allocation6], 256
    $region25: #{tpu_custom_call.1} parent=1 // pred_fallthru
      _
    %70 = vsyncpa [#allocation5], 1
    %71 = vsyncpa [#allocation8], 1
    %72 = vsyncpa [#allocation6], 1

</llo_original>
